<compile_context>
chip_gen: v7x
topology: tpu7x:2x2x1
jax: 0.10.0
libtpu: 0.0.40
codegen_flags: <defaults>
</compile_context>

<pallas_src>
import functools

import jax
import jax.numpy as jnp
from jax.experimental import pallas as pl
from jax.experimental.pallas import tpu as pltpu


def _softplus(x):
    # numerically stable softplus, matching torch.nn.functional.softplus
    return jnp.logaddexp(x, 0.0)


def _mi_kernel(compute_dtype,
               zpi_ref, zal_ref, zalf_ref,
               w1p_ref, w1a_ref, b1_ref, w2_ref, b2_ref, w3r_ref, b3_ref,
               out_ref):
    # Current batch block of z_pi / z_al (joint pairing) / flip(z_al) (marginal pairing).
    zpi = zpi_ref[...].astype(compute_dtype)
    zal = zal_ref[...].astype(compute_dtype)
    zalf = zalf_ref[...].astype(compute_dtype)

    w1p = w1p_ref[...]          # (D, H)  z_pi half of the concat first-layer weight
    w1a = w1a_ref[...]          # (D, H)  z_al half
    b1 = b1_ref[...]            # (1, H)
    w2 = w2_ref[...]            # (H, H)
    b2 = b2_ref[...]            # (1, H)
    w3r = w3r_ref[...]          # (1, H)  row layout of the (H, 1) head weight
    b3 = b3_ref[...]            # (1, 1)

    # Shared first-layer term z_pi @ W1_pi + b1 (the concat-input Linear splits
    # additively) -- computed once, reused by joint and marginal halves.
    base = jnp.dot(zpi, w1p, preferred_element_type=jnp.float32) + b1            # (tb, H)

    # Joint / marginal halves: two register-resident matmuls, no VMEM scratch.
    h1_j = jnp.maximum(jnp.dot(zal, w1a, preferred_element_type=jnp.float32) + base, 0.0)
    h1_m = jnp.maximum(jnp.dot(zalf, w1a, preferred_element_type=jnp.float32) + base, 0.0)

    h2_j = jnp.maximum(
        jnp.dot(h1_j.astype(compute_dtype), w2, preferred_element_type=jnp.float32) + b2, 0.0)
    h2_m = jnp.maximum(
        jnp.dot(h1_m.astype(compute_dtype), w2, preferred_element_type=jnp.float32) + b2, 0.0)

    # Final (H -> 1) head on the VPU/XLU (lane reduce) instead of an (H, 1) MXU matmul.
    l_joint = jnp.sum(h2_j * w3r, axis=-1, keepdims=True) + b3                   # (tb, 1)
    l_marg = jnp.sum(h2_m * w3r, axis=-1, keepdims=True) + b3                    # (tb, 1)

    # Per-block partial statistics (normalization happens in the wrapper).
    p_loss = jnp.sum(_softplus(-l_joint) + _softplus(l_marg))
    p_pos = jnp.sum((l_joint > 0.0).astype(jnp.float32))
    p_neg = jnp.sum((l_marg < 0.0).astype(jnp.float32))
    p_mi = jnp.sum(l_joint)

    # Pack the 4 scalars into sublane 0, lanes 0..3 of a lane-dense (8, 128) output tile
    # (unmasked vst; distinct block per grid step -> batch axis is safely "parallel").
    row = jax.lax.broadcasted_iota(jnp.int32, (8, 128), 0)
    lane = jax.lax.broadcasted_iota(jnp.int32, (8, 128), 1)
    tile = jnp.zeros((8, 128), jnp.float32)
    tile = jnp.where((row == 0) & (lane == 0), p_loss, tile)
    tile = jnp.where((row == 0) & (lane == 1), p_pos, tile)
    tile = jnp.where((row == 0) & (lane == 2), p_neg, tile)
    tile = jnp.where((row == 0) & (lane == 3), p_mi, tile)
    out_ref[...] = tile


def init_estimator_params(key, d, h):
    """Deterministic init of the MIEstimator MLP (PyTorch-Linear-style uniform)."""
    ks = jax.random.split(key, 6)
    d_in = 2 * d

    def uni(k, fan_in, shape):
        bound = 1.0 / jnp.sqrt(jnp.float32(fan_in))
        return jax.random.uniform(k, shape, jnp.float32, -bound, bound)

    w1 = uni(ks[0], d_in, (d_in, h))
    w1p, w1a = w1[:d], w1[d:]              # split the concat weight: [z_pi | z_al]
    b1 = uni(ks[1], d_in, (1, h))
    w2 = uni(ks[2], h, (h, h))
    b2 = uni(ks[3], h, (1, h))
    w3_row = uni(ks[4], h, (1, h))         # row layout (== w3.T) for the VPU final layer
    b3 = uni(ks[5], h, (1, 1))
    return (w1p, w1a, b1, w2, b2, w3_row, b3)


def _pick_tile_b(b):
    """Largest batch tile <= 512 that's either the full batch or a multiple-of-8 divisor."""
    if b <= 512:
        return b
    assert b % 8 == 0, "for B > 512 the batch must be a multiple of 8"
    tb = 512
    while b % tb != 0:
        tb -= 8
    return tb


def mi_forward(z_pi, z_al, params, tile_b=None, compute_dtype=jnp.float32):
    """Returns (mi, loss, acc) scalars, matching MI.forward's computed quantities."""
    B, D = z_pi.shape
    w1p, w1a, b1, w2, b2, w3r, b3 = params

    if tile_b is None:
        tile_b = _pick_tile_b(B)
    assert B % tile_b == 0, "tile_b must divide B"
    nb = B // tile_b

    # torch.flip(z_al, dims=(0,)) done once, bit-exactly, outside the kernel
    # (removes the per-step in-kernel reversal entirely).
    z_al_flip = jnp.flip(z_al, axis=0)

    # Optional bf16 MXU inputs (f32 accumulation): cast the matmul weights once here.
    if compute_dtype != jnp.float32:
        w1p, w1a, w2 = (w.astype(compute_dtype) for w in (w1p, w1a, w2))

    kernel = functools.partial(_mi_kernel, compute_dtype)
    vmem_spec = pl.BlockSpec(memory_space=pltpu.MemorySpace.VMEM)   # whole array, VMEM-resident

    grid_spec = pltpu.PrefetchScalarGridSpec(
        num_scalar_prefetch=0,
        grid=(nb,),
        in_specs=[
            pl.BlockSpec((tile_b, D), lambda i: (i, 0)),    # z_pi        block i
            pl.BlockSpec((tile_b, D), lambda i: (i, 0)),    # z_al        block i (joint)
            pl.BlockSpec((tile_b, D), lambda i: (i, 0)),    # flip(z_al)  block i (marginal)
            vmem_spec, vmem_spec, vmem_spec,                # w1p, w1a, b1
            vmem_spec, vmem_spec,                           # w2, b2
            vmem_spec, vmem_spec,                           # w3 row, b3
        ],
        out_specs=pl.BlockSpec((8, 128), lambda i: (i, 0)),  # one partial-sum tile per block
    )

    partials = pl.pallas_call(
        kernel,
        grid_spec=grid_spec,
        out_shape=jax.ShapeDtypeStruct((nb * 8, 128), jnp.float32),
        compiler_params=pltpu.CompilerParams(
            dimension_semantics=("parallel",),              # megacore-shardable on v7x
            vmem_limit_bytes=32 * 1024 * 1024,
        ),
    )(z_pi, z_al, z_al_flip, w1p, w1a, b1, w2, b2, w3r, b3)

    # Final reduction in the wrapper: only sublane 0 of each block is non-zero.
    sums = jnp.sum(partials, axis=0)                        # (128,)
    inv_b = 1.0 / float(B)
    loss = 0.5 * sums[0] * inv_b
    acc = 0.5 * (sums[1] + sums[2]) * inv_b
    mi = sums[3] * inv_b
    return mi, loss, acc


def mi_reference(z_pi, z_al, params):
    """Pure-JAX reference of the same forward math (for a sanity check)."""
    w1p, w1a, b1, w2, b2, w3r, b3 = params
    hp = jax.lax.Precision.HIGHEST

    def T(z_a):
        h = jnp.maximum(jnp.dot(z_pi, w1p, precision=hp)
                        + jnp.dot(z_a, w1a, precision=hp) + b1, 0.0)
        h = jnp.maximum(jnp.dot(h, w2, precision=hp) + b2, 0.0)
        return jnp.dot(h, w3r.T, precision=hp) + b3

    l_joint = T(z_al)
    l_marg = T(jnp.flip(z_al, axis=0))
    loss = 0.5 * jnp.mean(_softplus(-l_joint) + _softplus(l_marg))
    acc = 0.5 * (jnp.mean((l_joint > 0).astype(jnp.float32))
                 + jnp.mean((l_marg < 0).astype(jnp.float32)))
    mi = jnp.mean(l_joint)
    return mi, loss, acc


if __name__ == "__main__":
    D, H = 32, 128
    key = jax.random.PRNGKey(0)
    k_pi, k_al, k_w, k_pi2, k_al2 = jax.random.split(key, 5)
    params = init_estimator_params(k_w, D, H)

    # Small single-block case.
    B = 8
    z_pi = jax.random.normal(k_pi, (B, D), jnp.float32)
    z_al = jax.random.normal(k_al, (B, D), jnp.float32)
    mi, loss, acc = jax.jit(mi_forward)(z_pi, z_al, params)
    jax.block_until_ready((mi, loss, acc))
    assert jnp.isfinite(mi) and jnp.isfinite(loss) and jnp.isfinite(acc)

    mi_r, loss_r, acc_r = jax.jit(mi_reference)(z_pi, z_al, params)
    assert abs(float(mi) - float(mi_r)) < 5e-2
    assert abs(float(loss) - float(loss_r)) < 5e-2

    # Multi-block case (exercises the flipped pairing across blocks and the
    # per-block partial-sum reduction path).
    B2 = 64
    z_pi2 = jax.random.normal(k_pi2, (B2, D), jnp.float32)
    z_al2 = jax.random.normal(k_al2, (B2, D), jnp.float32)
    mi2, loss2, acc2 = jax.jit(functools.partial(mi_forward, tile_b=16))(z_pi2, z_al2, params)
    mi2_r, loss2_r, acc2_r = jax.jit(mi_reference)(z_pi2, z_al2, params)
    assert abs(float(mi2) - float(mi2_r)) < 5e-2
    assert abs(float(loss2) - float(loss2_r)) < 5e-2
    assert jnp.isfinite(acc2)

    # Optional bf16-compute path (looser numerics; just check it runs and is finite).
    mi_b, loss_b, acc_b = jax.jit(
        functools.partial(mi_forward, compute_dtype=jnp.bfloat16))(z_pi, z_al, params)
    jax.block_until_ready((mi_b, loss_b, acc_b))
    assert jnp.isfinite(mi_b) and jnp.isfinite(loss_b) and jnp.isfinite(acc_b)

    print("KERNEL_OK")
</pallas_src>

<mosaic_0001>
module attributes {stable_mosaic.version = 11 : i64} {
  func.func @_mi_kernel(%arg0: i32, %arg1: memref<8x32xf32, #tpu.memory_space<vmem>>, %arg2: memref<8x32xf32, #tpu.memory_space<vmem>>, %arg3: memref<8x32xf32, #tpu.memory_space<vmem>>, %arg4: memref<32x128xf32, #tpu.memory_space<vmem>>, %arg5: memref<32x128xf32, #tpu.memory_space<vmem>>, %arg6: memref<1x128xf32, #tpu.memory_space<vmem>>, %arg7: memref<128x128xf32, #tpu.memory_space<vmem>>, %arg8: memref<1x128xf32, #tpu.memory_space<vmem>>, %arg9: memref<1x128xf32, #tpu.memory_space<vmem>>, %arg10: memref<1x1xf32, #tpu.memory_space<vmem>>, %arg11: memref<8x128xf32, #tpu.memory_space<vmem>>) attributes {dimension_semantics = [#tpu.dimension_semantics<parallel>], iteration_bounds = array<i64: 1>, scalar_prefetch = 0 : i64, scratch_operands = 0 : i64, tpu.core_type = #tpu.core_type<tc>, window_params = [{transform_indices = @transform_0, window_bounds = array<i64: 8, 32>}, {transform_indices = @transform_1, window_bounds = array<i64: 8, 32>}, {transform_indices = @transform_2, window_bounds = array<i64: 8, 32>}, {pipeline_mode = #tpu.pipeline_mode<synchronous>, transform_indices = @transform_3, window_bounds = array<i64: 32, 128>}, {pipeline_mode = #tpu.pipeline_mode<synchronous>, transform_indices = @transform_4, window_bounds = array<i64: 32, 128>}, {pipeline_mode = #tpu.pipeline_mode<synchronous>, transform_indices = @transform_5, window_bounds = array<i64: 1, 128>}, {pipeline_mode = #tpu.pipeline_mode<synchronous>, transform_indices = @transform_6, window_bounds = array<i64: 128, 128>}, {pipeline_mode = #tpu.pipeline_mode<synchronous>, transform_indices = @transform_7, window_bounds = array<i64: 1, 128>}, {pipeline_mode = #tpu.pipeline_mode<synchronous>, transform_indices = @transform_8, window_bounds = array<i64: 1, 128>}, {pipeline_mode = #tpu.pipeline_mode<synchronous>, transform_indices = @transform_9, window_bounds = array<i64: 1, 1>}, {transform_indices = @transform_10, window_bounds = array<i64: 8, 128>}]} {
    %c0 = arith.constant 0 : index
    %c0_0 = arith.constant 0 : index
    %0 = vector.load %arg1[%c0, %c0_0] : memref<8x32xf32, #tpu.memory_space<vmem>>, vector<8x32xf32>
    %c0_1 = arith.constant 0 : index
    %c0_2 = arith.constant 0 : index
    %1 = vector.load %arg2[%c0_1, %c0_2] : memref<8x32xf32, #tpu.memory_space<vmem>>, vector<8x32xf32>
    %c0_3 = arith.constant 0 : index
    %c0_4 = arith.constant 0 : index
    %2 = vector.load %arg3[%c0_3, %c0_4] : memref<8x32xf32, #tpu.memory_space<vmem>>, vector<8x32xf32>
    %c0_5 = arith.constant 0 : index
    %c0_6 = arith.constant 0 : index
    %3 = vector.load %arg4[%c0_5, %c0_6] : memref<32x128xf32, #tpu.memory_space<vmem>>, vector<32x128xf32>
    %c0_7 = arith.constant 0 : index
    %c0_8 = arith.constant 0 : index
    %4 = vector.load %arg5[%c0_7, %c0_8] : memref<32x128xf32, #tpu.memory_space<vmem>>, vector<32x128xf32>
    %c0_9 = arith.constant 0 : index
    %c0_10 = arith.constant 0 : index
    %5 = vector.load %arg6[%c0_9, %c0_10] : memref<1x128xf32, #tpu.memory_space<vmem>>, vector<1x128xf32>
    %c0_11 = arith.constant 0 : index
    %c0_12 = arith.constant 0 : index
    %6 = vector.load %arg7[%c0_11, %c0_12] : memref<128x128xf32, #tpu.memory_space<vmem>>, vector<128x128xf32>
    %c0_13 = arith.constant 0 : index
    %c0_14 = arith.constant 0 : index
    %7 = vector.load %arg8[%c0_13, %c0_14] : memref<1x128xf32, #tpu.memory_space<vmem>>, vector<1x128xf32>
    %c0_15 = arith.constant 0 : index
    %c0_16 = arith.constant 0 : index
    %8 = vector.load %arg9[%c0_15, %c0_16] : memref<1x128xf32, #tpu.memory_space<vmem>>, vector<1x128xf32>
    %c0_17 = arith.constant 0 : index
    %c0_18 = arith.constant 0 : index
    %9 = vector.load %arg10[%c0_17, %c0_18] : memref<1x1xf32, #tpu.memory_space<vmem>>, vector<1x1xf32>
    %cst = arith.constant dense<0.000000e+00> : vector<8x128xf32>
    %10 = tpu.matmul %0, %3, %cst {dimension_numbers = #tpu.dot_dimension_numbers<[1], [0], [0], [1], [0, 0, 1, 1], [], []>} : vector<8x32xf32>, vector<32x128xf32>, vector<8x128xf32> -> vector<8x128xf32>
    %11 = vector.broadcast %5 : vector<1x128xf32> to vector<8x128xf32>
    %12 = arith.addf %10, %11 : vector<8x128xf32>
    %cst_19 = arith.constant dense<0.000000e+00> : vector<8x128xf32>
    %13 = tpu.matmul %1, %4, %cst_19 {dimension_numbers = #tpu.dot_dimension_numbers<[1], [0], [0], [1], [0, 0, 1, 1], [], []>} : vector<8x32xf32>, vector<32x128xf32>, vector<8x128xf32> -> vector<8x128xf32>
    %14 = arith.addf %13, %12 : vector<8x128xf32>
    %cst_20 = arith.constant 0.000000e+00 : f32
    %15 = vector.broadcast %cst_20 : f32 to vector<8x128xf32>
    %16 = arith.maximumf %14, %15 : vector<8x128xf32>
    %cst_21 = arith.constant dense<0.000000e+00> : vector<8x128xf32>
    %17 = tpu.matmul %2, %4, %cst_21 {dimension_numbers = #tpu.dot_dimension_numbers<[1], [0], [0], [1], [0, 0, 1, 1], [], []>} : vector<8x32xf32>, vector<32x128xf32>, vector<8x128xf32> -> vector<8x128xf32>
    %18 = arith.addf %17, %12 : vector<8x128xf32>
    %cst_22 = arith.constant 0.000000e+00 : f32
    %19 = vector.broadcast %cst_22 : f32 to vector<8x128xf32>
    %20 = arith.maximumf %18, %19 : vector<8x128xf32>
    %cst_23 = arith.constant dense<0.000000e+00> : vector<8x128xf32>
    %21 = tpu.matmul %16, %6, %cst_23 {dimension_numbers = #tpu.dot_dimension_numbers<[1], [0], [0], [1], [0, 0, 1, 1], [], []>} : vector<8x128xf32>, vector<128x128xf32>, vector<8x128xf32> -> vector<8x128xf32>
    %22 = vector.broadcast %7 : vector<1x128xf32> to vector<8x128xf32>
    %23 = arith.addf %21, %22 : vector<8x128xf32>
    %cst_24 = arith.constant 0.000000e+00 : f32
    %24 = vector.broadcast %cst_24 : f32 to vector<8x128xf32>
    %25 = arith.maximumf %23, %24 : vector<8x128xf32>
    %cst_25 = arith.constant dense<0.000000e+00> : vector<8x128xf32>
    %26 = tpu.matmul %20, %6, %cst_25 {dimension_numbers = #tpu.dot_dimension_numbers<[1], [0], [0], [1], [0, 0, 1, 1], [], []>} : vector<8x128xf32>, vector<128x128xf32>, vector<8x128xf32> -> vector<8x128xf32>
    %27 = vector.broadcast %7 : vector<1x128xf32> to vector<8x128xf32>
    %28 = arith.addf %26, %27 : vector<8x128xf32>
    %cst_26 = arith.constant 0.000000e+00 : f32
    %29 = vector.broadcast %cst_26 : f32 to vector<8x128xf32>
    %30 = arith.maximumf %28, %29 : vector<8x128xf32>
    %31 = vector.broadcast %8 : vector<1x128xf32> to vector<8x128xf32>
    %32 = arith.mulf %25, %31 : vector<8x128xf32>
    %cst_27 = arith.constant dense<0.000000e+00> : vector<8xf32>
    %33 = vector.multi_reduction <add>, %32, %cst_27 [1] : vector<8x128xf32> to vector<8xf32>
    %34 = vector.shape_cast %33 : vector<8xf32> to vector<8x1xf32>
    %35 = vector.broadcast %9 : vector<1x1xf32> to vector<8x1xf32>
    %36 = arith.addf %34, %35 : vector<8x1xf32>
    %37 = vector.broadcast %8 : vector<1x128xf32> to vector<8x128xf32>
    %38 = arith.mulf %30, %37 : vector<8x128xf32>
    %cst_28 = arith.constant dense<0.000000e+00> : vector<8xf32>
    %39 = vector.multi_reduction <add>, %38, %cst_28 [1] : vector<8x128xf32> to vector<8xf32>
    %40 = vector.shape_cast %39 : vector<8xf32> to vector<8x1xf32>
    %41 = vector.broadcast %9 : vector<1x1xf32> to vector<8x1xf32>
    %42 = arith.addf %40, %41 : vector<8x1xf32>
    %cst_29 = arith.constant 0.000000e+00 : f32
    %43 = vector.broadcast %cst_29 : f32 to vector<8x1xf32>
    %44 = arith.subf %43, %36 : vector<8x1xf32>
    %cst_30 = arith.constant 0.000000e+00 : f32
    %45 = vector.broadcast %cst_30 : f32 to vector<8x1xf32>
    %46 = arith.maximumf %44, %45 : vector<8x1xf32>
    %47 = vector.broadcast %cst_30 : f32 to vector<8x1xf32>
    %48 = arith.subf %44, %47 : vector<8x1xf32>
    %49 = arith.cmpf one, %48, %48 : vector<8x1xf32>
    %50 = vector.broadcast %cst_30 : f32 to vector<8x1xf32>
    %51 = arith.addf %44, %50 : vector<8x1xf32>
    %52 = math.absf %48 : vector<8x1xf32>
    %cst_31 = arith.constant 0.000000e+00 : f32
    %53 = vector.broadcast %cst_31 : f32 to vector<8x1xf32>
    %54 = arith.subf %53, %52 : vector<8x1xf32>
    %55 = math.exp %54 : vector<8x1xf32>
    %56 = math.log1p %55 : vector<8x1xf32>
    %57 = arith.addf %46, %56 : vector<8x1xf32>
    %58 = arith.select %49, %51, %57 : vector<8x1xi1>, vector<8x1xf32>
    %cst_32 = arith.constant 0.000000e+00 : f32
    %59 = vector.broadcast %cst_32 : f32 to vector<8x1xf32>
    %60 = arith.maximumf %42, %59 : vector<8x1xf32>
    %61 = vector.broadcast %cst_32 : f32 to vector<8x1xf32>
    %62 = arith.subf %42, %61 : vector<8x1xf32>
    %63 = arith.cmpf one, %62, %62 : vector<8x1xf32>
    %64 = vector.broadcast %cst_32 : f32 to vector<8x1xf32>
    %65 = arith.addf %42, %64 : vector<8x1xf32>
    %66 = math.absf %62 : vector<8x1xf32>
    %cst_33 = arith.constant 0.000000e+00 : f32
    %67 = vector.broadcast %cst_33 : f32 to vector<8x1xf32>
    %68 = arith.subf %67, %66 : vector<8x1xf32>
    %69 = math.exp %68 : vector<8x1xf32>
    %70 = math.log1p %69 : vector<8x1xf32>
    %71 = arith.addf %60, %70 : vector<8x1xf32>
    %72 = arith.select %63, %65, %71 : vector<8x1xi1>, vector<8x1xf32>
    %73 = arith.addf %58, %72 : vector<8x1xf32>
    %74 = vector.shape_cast %73 : vector<8x1xf32> to vector<1x8x1xf32>
    %cst_34 = arith.constant dense<0.000000e+00> : vector<1xf32>
    %75 = vector.multi_reduction <add>, %74, %cst_34 [1, 2] : vector<1x8x1xf32> to vector<1xf32>
    %76 = vector.shape_cast %75 : vector<1xf32> to vector<1x1x1xf32>
    %77 = vector.extract %76[0, 0, 0] : f32 from vector<1x1x1xf32>
    %cst_35 = arith.constant 0.000000e+00 : f32
    %78 = vector.broadcast %cst_35 : f32 to vector<8x1xf32>
    %79 = arith.cmpf ogt, %36, %78 : vector<8x1xf32>
    %80 = arith.extui %79 : vector<8x1xi1> to vector<8x1xi32>
    %81 = arith.sitofp %80 : vector<8x1xi32> to vector<8x1xf32>
    %82 = vector.shape_cast %81 : vector<8x1xf32> to vector<1x8x1xf32>
    %cst_36 = arith.constant dense<0.000000e+00> : vector<1xf32>
    %83 = vector.multi_reduction <add>, %82, %cst_36 [1, 2] : vector<1x8x1xf32> to vector<1xf32>
    %84 = vector.shape_cast %83 : vector<1xf32> to vector<1x1x1xf32>
    %85 = vector.extract %84[0, 0, 0] : f32 from vector<1x1x1xf32>
    %cst_37 = arith.constant 0.000000e+00 : f32
    %86 = vector.broadcast %cst_37 : f32 to vector<8x1xf32>
    %87 = arith.cmpf olt, %42, %86 : vector<8x1xf32>
    %88 = arith.extui %87 : vector<8x1xi1> to vector<8x1xi32>
    %89 = arith.sitofp %88 : vector<8x1xi32> to vector<8x1xf32>
    %90 = vector.shape_cast %89 : vector<8x1xf32> to vector<1x8x1xf32>
    %cst_38 = arith.constant dense<0.000000e+00> : vector<1xf32>
    %91 = vector.multi_reduction <add>, %90, %cst_38 [1, 2] : vector<1x8x1xf32> to vector<1xf32>
    %92 = vector.shape_cast %91 : vector<1xf32> to vector<1x1x1xf32>
    %93 = vector.extract %92[0, 0, 0] : f32 from vector<1x1x1xf32>
    %94 = vector.shape_cast %36 : vector<8x1xf32> to vector<1x8x1xf32>
    %cst_39 = arith.constant dense<0.000000e+00> : vector<1xf32>
    %95 = vector.multi_reduction <add>, %94, %cst_39 [1, 2] : vector<1x8x1xf32> to vector<1xf32>
    %96 = vector.shape_cast %95 : vector<1xf32> to vector<1x1x1xf32>
    %97 = vector.extract %96[0, 0, 0] : f32 from vector<1x1x1xf32>
    %98 = tpu.iota {dimensions = array<i32: 0>} : vector<8x128xi32>
    %99 = tpu.iota {dimensions = array<i32: 1>} : vector<8x128xi32>
    %cst_40 = arith.constant 0.000000e+00 : f32
    %100 = vector.broadcast %cst_40 : f32 to vector<8x128xf32>
    %c0_i32 = arith.constant 0 : i32
    %101 = vector.broadcast %c0_i32 : i32 to vector<8x128xi32>
    %102 = arith.cmpi eq, %98, %101 : vector<8x128xi32>
    %c0_i32_41 = arith.constant 0 : i32
    %103 = vector.broadcast %c0_i32_41 : i32 to vector<8x128xi32>
    %104 = arith.cmpi eq, %99, %103 : vector<8x128xi32>
    %105 = arith.andi %102, %104 : vector<8x128xi1>
    %106 = vector.broadcast %77 : f32 to vector<8x128xf32>
    %107 = arith.select %105, %106, %100 : vector<8x128xi1>, vector<8x128xf32>
    %c0_i32_42 = arith.constant 0 : i32
    %108 = vector.broadcast %c0_i32_42 : i32 to vector<8x128xi32>
    %109 = arith.cmpi eq, %98, %108 : vector<8x128xi32>
    %c1_i32 = arith.constant 1 : i32
    %110 = vector.broadcast %c1_i32 : i32 to vector<8x128xi32>
    %111 = arith.cmpi eq, %99, %110 : vector<8x128xi32>
    %112 = arith.andi %109, %111 : vector<8x128xi1>
    %113 = vector.broadcast %85 : f32 to vector<8x128xf32>
    %114 = arith.select %112, %113, %107 : vector<8x128xi1>, vector<8x128xf32>
    %c0_i32_43 = arith.constant 0 : i32
    %115 = vector.broadcast %c0_i32_43 : i32 to vector<8x128xi32>
    %116 = arith.cmpi eq, %98, %115 : vector<8x128xi32>
    %c2_i32 = arith.constant 2 : i32
    %117 = vector.broadcast %c2_i32 : i32 to vector<8x128xi32>
    %118 = arith.cmpi eq, %99, %117 : vector<8x128xi32>
    %119 = arith.andi %116, %118 : vector<8x128xi1>
    %120 = vector.broadcast %93 : f32 to vector<8x128xf32>
    %121 = arith.select %119, %120, %114 : vector<8x128xi1>, vector<8x128xf32>
    %c0_i32_44 = arith.constant 0 : i32
    %122 = vector.broadcast %c0_i32_44 : i32 to vector<8x128xi32>
    %123 = arith.cmpi eq, %98, %122 : vector<8x128xi32>
    %c3_i32 = arith.constant 3 : i32
    %124 = vector.broadcast %c3_i32 : i32 to vector<8x128xi32>
    %125 = arith.cmpi eq, %99, %124 : vector<8x128xi32>
    %126 = arith.andi %123, %125 : vector<8x128xi1>
    %127 = vector.broadcast %97 : f32 to vector<8x128xf32>
    %128 = arith.select %126, %127, %121 : vector<8x128xi1>, vector<8x128xf32>
    %c0_45 = arith.constant 0 : index
    %c0_46 = arith.constant 0 : index
    %129 = vector.load %arg11[%c0_45, %c0_46] : memref<8x128xf32, #tpu.memory_space<vmem>>, vector<8x128xf32>
    tpu.vector_store %arg11[%c0_45, %c0_46], %128 {strides = array<i32>} : memref<8x128xf32, #tpu.memory_space<vmem>>, vector<8x128xf32>,
    return
  }
  func.func @transform_0(%arg0: i32) -> (i32, i32) {
    %c0_i32 = arith.constant 0 : i32
    %c0_i32_0 = arith.constant 0 : i32
    return %arg0, %c0_i32 : i32, i32
  }
  func.func @transform_1(%arg0: i32) -> (i32, i32) {
    %c0_i32 = arith.constant 0 : i32
    %c0_i32_0 = arith.constant 0 : i32
    return %arg0, %c0_i32 : i32, i32
  }
  func.func @transform_2(%arg0: i32) -> (i32, i32) {
    %c0_i32 = arith.constant 0 : i32
    %c0_i32_0 = arith.constant 0 : i32
    return %arg0, %c0_i32 : i32, i32
  }
  func.func @transform_3(%arg0: i32) -> (i32, i32) {
    %c0_i32 = arith.constant 0 : i32
    %c0_i32_0 = arith.constant 0 : i32
    %c0_i32_1 = arith.constant 0 : i32
    return %c0_i32, %c0_i32_0 : i32, i32
  }
  func.func @transform_4(%arg0: i32) -> (i32, i32) {
    %c0_i32 = arith.constant 0 : i32
    %c0_i32_0 = arith.constant 0 : i32
    %c0_i32_1 = arith.constant 0 : i32
    return %c0_i32, %c0_i32_0 : i32, i32
  }
  func.func @transform_5(%arg0: i32) -> (i32, i32) {
    %c0_i32 = arith.constant 0 : i32
    %c0_i32_0 = arith.constant 0 : i32
    %c0_i32_1 = arith.constant 0 : i32
    return %c0_i32, %c0_i32_0 : i32, i32
  }
  func.func @transform_6(%arg0: i32) -> (i32, i32) {
    %c0_i32 = arith.constant 0 : i32
    %c0_i32_0 = arith.constant 0 : i32
    %c0_i32_1 = arith.constant 0 : i32
    return %c0_i32, %c0_i32_0 : i32, i32
  }
  func.func @transform_7(%arg0: i32) -> (i32, i32) {
    %c0_i32 = arith.constant 0 : i32
    %c0_i32_0 = arith.constant 0 : i32
    %c0_i32_1 = arith.constant 0 : i32
    return %c0_i32, %c0_i32_0 : i32, i32
  }
  func.func @transform_8(%arg0: i32) -> (i32, i32) {
    %c0_i32 = arith.constant 0 : i32
    %c0_i32_0 = arith.constant 0 : i32
    %c0_i32_1 = arith.constant 0 : i32
    return %c0_i32, %c0_i32_0 : i32, i32
  }
  func.func @transform_9(%arg0: i32) -> (i32, i32) {
    %c0_i32 = arith.constant 0 : i32
    %c0_i32_0 = arith.constant 0 : i32
    %c0_i32_1 = arith.constant 0 : i32
    return %c0_i32, %c0_i32_0 : i32, i32
  }
  func.func @transform_10(%arg0: i32) -> (i32, i32) {
    %c0_i32 = arith.constant 0 : i32
    %c0_i32_0 = arith.constant 0 : i32
    return %arg0, %c0_i32 : i32, i32
  }
}

</mosaic_0001>

<llo_original>
// kernel: mi_forward.1
$region0: #{mi_forward.1}
  #allocation0 [shape = 'u32[]', space=smem, size = 0x4, offset = 0x4, fixed_abs, tag = 'smem constant byte address 0x4 - core index']
  #allocation1 [shape = 'u32[144,128]{1,0:T(1,128)}', space=vmem, size = 0x12000, scoped, tag = 'internal scratch']
  #allocation2 [shape = 'f32[1,1]{1,0:T(1,128)S(1)}', space=vmem, size = 0x200, scoped, tag = 'scoped memory for mi_forward.1']
  %s0 = inlined_call_operand.vmem [shape: f32[8,32], index: 0, kind: input, shape index: {}]
  %s1 = inlined_call_operand.vmem [shape: f32[8,32], index: 1, kind: input, shape index: {}]
  %s2 = inlined_call_operand.vmem [shape: f32[8,32], index: 2, kind: input, shape index: {}]
  %s3 = inlined_call_operand.hbm [shape: f32[32,128], index: 3, kind: input, shape index: {}]
  %s4 = inlined_call_operand.hbm [shape: f32[32,128], index: 4, kind: input, shape index: {}]
  %s5 = inlined_call_operand.vmem [shape: f32[1,128], index: 5, kind: input, shape index: {}]
  %s6 = inlined_call_operand.hbm [shape: f32[128,128], index: 6, kind: input, shape index: {}]
  %s7 = inlined_call_operand.vmem [shape: f32[1,128], index: 7, kind: input, shape index: {}]
  %s8 = inlined_call_operand.vmem [shape: f32[1,128], index: 8, kind: input, shape index: {}]
  %s9 = inlined_call_operand.<no memory space> [shape: f32[1,1], index: 9, kind: input, shape index: {}]
  %s10 = inlined_call_operand.vmem [shape: f32[8,128], index: 10, kind: output, shape index: {}]
  %s11 = sld [smem:[#allocation0]]
  $region62: #{mi_forward.1} parent=0
    _
  %s13 = ssub.s32 1, %s11
  %s14 = scalar_select 0, %s13, %s11
  %v15 = vstv %s9
  %16 = vst [vmem:[#allocation2] sm:$0x1] %v15
  $region1: #{mi_forward.1} parent=0
    #allocation3 [shape = 'u8[16384]{0}', space=vmem, size = 0x4000, scoped, tag = 'input window, operand 3, single buffered']
    #allocation4 [shape = 's32[1]{0}', space=sflag, size = 0x4, scoped, tag = 'scoped memory for mi_forward.1']
    #allocation5 [shape = 'u8[16384]{0}', space=vmem, size = 0x4000, scoped, tag = 'input window, operand 4, single buffered']
    #allocation6 [shape = 's32[1]{0}', space=sflag, size = 0x4, scoped, tag = 'scoped memory for mi_forward.1']
    #allocation7 [shape = 'u8[65536]{0}', space=vmem, size = 0x10000, scoped, tag = 'input window, operand 6, single buffered']
    %17 = vsyncpa [#allocation4], 0
    %18 = vsyncpa [#allocation6], 0
    // Predicated region
    $region2: #{mi_forward.1} parent=1 // pred_check
      _
    $region3: #{mi_forward.1} parent=1 // pred_check_branch
      %20 = sbr.rel (0) target = $region5
    $region4: #{mi_forward.1} parent=1 // pred_region
      _
    $region5: #{mi_forward.1} parent=1 // pred_fallthru
      _
    // Predicated region
    $region6: #{mi_forward.1} parent=1 // pred_check
      _
    $region7: #{mi_forward.1} parent=1 // pred_check_branch
      %22 = sbr.rel (0) target = $region9
    $region8: #{mi_forward.1} parent=1 // pred_region
      _
    $region9: #{mi_forward.1} parent=1 // pred_fallthru
      _
    // Predicated region
    $region10: #{mi_forward.1} parent=1 // pred_check
      _
    $region11: #{mi_forward.1} parent=1 // pred_check_branch
      %24 = sbr.rel (0) target = $region13
    $region12: #{mi_forward.1} parent=1 // pred_region
      _
    $region13: #{mi_forward.1} parent=1 // pred_fallthru
      _
    // Predicated region
    $region14: #{mi_forward.1} parent=1 // pred_check
      _
    $region15: #{mi_forward.1} parent=1 // pred_check_branch
      %26 = sbr.rel (0) target = $region17
    $region16: #{mi_forward.1} parent=1 // pred_region
      %s28 = ssub.s32 512, 512
      %29 = vsyncadd [#allocation4], %s28
      %s30 = sshll.u32 [#allocation3], 4
      %s31 = int_to_ptr.vmem [resolvable:$true] %s30
      %36 = dma.hbm_to_vmem [thread:$0]  %s3, 512, %s31, [#allocation4], 128, 128, 8
    $region17: #{mi_forward.1} parent=1 // pred_fallthru
      _
    // Predicated region
    $region18: #{mi_forward.1} parent=1 // pred_check
      _
    $region19: #{mi_forward.1} parent=1 // pred_check_branch
      %38 = sbr.rel (0) target = $region21
    $region20: #{mi_forward.1} parent=1 // pred_region
      %s40 = ssub.s32 512, 512
      %41 = vsyncadd [#allocation6], %s40
      %s42 = sshll.u32 [#allocation5], 4
      %s43 = int_to_ptr.vmem [resolvable:$true] %s42
      %48 = dma.hbm_to_vmem [thread:$0]  %s4, 512, %s43, [#allocation6], 128, 128, 8
    $region21: #{mi_forward.1} parent=1 // pred_fallthru
      _
    // Predicated region
    $region22: #{mi_forward.1} parent=1 // pred_check
      _
    $region23: #{mi_forward.1} parent=1 // pred_check_branch
      %50 = sbr.rel (0) target = $region25
    $region24: #{mi_forward.1} parent=1 // pred_region
      _
    $region25: #{mi_forward.1} parent=1 // pred_fallthru
      _
    // Predicated region
    $region26: #{mi_forward.1} parent=1 // pred_check
      _
    $region27: #{mi_forward.1} parent=1 // pred_check_branch
      %52 = sbr.rel (0) target = $region29
    $region28: #{mi_forward.1} parent=1 // pred_region
      %s54 = ssub.s32 2048, 2048
      %55 = vsyncadd [#allocation6], %s54
      %s56 = sshll.u32 [#allocation7], 4
      %s57 = int_to_ptr.vmem [resolvable:$true] %s56
      %62 = dma.hbm_to_vmem [thread:$0]  %s6, 2048, %s57, [#allocation6], 128, 128, 8
    $region29: #{mi_forward.1} parent=1 // pred_fallthru
      _
    // Predicated region
    $region30: #{mi_forward.1} parent=1 // pred_check
      _
    $region31: #{mi_forward.1} parent=1 // pred_check_branch
      %64 = sbr.rel (0) target = $region33
    $region32: #{mi_forward.1} parent=1 // pred_region
      _
    $region33: #{mi_forward.1} parent=1 // pred_fallthru
      _
    // Predicated region
    $region34: #{mi_forward.1} parent=1 // pred_check
      _
    $region35: #{mi_forward.1} parent=1 // pred_check_branch
      %66 = sbr.rel (0) target = $region37
    $region36: #{mi_forward.1} parent=1 // pred_region
      _
    $region37: #{mi_forward.1} parent=1 // pred_fallthru
      _
    // Predicated region
    $region38: #{mi_forward.1} parent=1 // pred_check
      _
    $region39: #{mi_forward.1} parent=1 // pred_check_branch
      %68 = sbr.rel (0) target = $region41
    $region40: #{mi_forward.1} parent=1 // pred_region
      _
    $region41: #{mi_forward.1} parent=1 // pred_fallthru
      _
    // Predicated region
    $region42: #{mi_forward.1} parent=1 // pred_check
      _
    $region43: #{mi_forward.1} parent=1 // pred_check_branch
      %70 = sbr.rel (0) target = $region45
    $region44: #{mi_forward.1} parent=1 // pred_region
      %71 = dma.done [#allocation4], 512
    $region45: #{mi_forward.1} parent=1 // pred_fallthru
      _
    // Predicated region
    $region46: #{mi_forward.1} parent=1 // pred_check
      _
    $region47: #{mi_forward.1} parent=1 // pred_check_branch
      %73 = sbr.rel (0) target = $region49
    $region48: #{mi_forward.1} parent=1 // pred_region
      %74 = dma.done [#allocation6], 512
    $region49: #{mi_forward.1} parent=1 // pred_fallthru
      _
    // Predicated region
    $region50: #{mi_forward.1} parent=1 // pred_check
      _
    $region51: #{mi_forward.1} parent=1 // pred_check_branch
      %76 = sbr.rel (0) target = $region53
    $region52: #{mi_forward.1} parent=1 // pred_region
      %77 = dma.done [#allocation6], 2048
    $region53: #{mi_forward.1} parent=1 // pred_fallthru
      _
    %v78 = vld [vmem:[%s0] sm:$0xff]
    %v79 = vld [vmem:[%s1] sm:$0xff]
    %v80 = vld [vmem:[%s2] sm:$0xff]
    %v81 = vld [vmem:[#allocation3] sm:$0xff]
    %v82 = vld [vmem:[#allocation3 + $0x8] sm:$0xff]
    %v83 = vld [vmem:[#allocation3 + $0x10] sm:$0xff]
    %v84 = vld [vmem:[#allocation3 + $0x18] sm:$0xff]
    %v85 = vld [vmem:[#allocation5] sm:$0xff]
    %v86 = vld [vmem:[#allocation5 + $0x8] sm:$0xff]
    %v87 = vld [vmem:[#allocation5 + $0x10] sm:$0xff]
    %v88 = vld [vmem:[#allocation5 + $0x18] sm:$0xff]
    %v89 = vld [vmem:[%s5] sm:$0x1]
    %v90 = vld [vmem:[#allocation7] sm:$0xff]
    %v91 = vld [vmem:[#allocation7 + $0x8] sm:$0xff]
    %v92 = vld [vmem:[#allocation7 + $0x10] sm:$0xff]
    %v93 = vld [vmem:[#allocation7 + $0x18] sm:$0xff]
    %v94 = vld [vmem:[#allocation7 + $0x20] sm:$0xff]
    %v95 = vld [vmem:[#allocation7 + $0x28] sm:$0xff]
    %v96 = vld [vmem:[#allocation7 + $0x30] sm:$0xff]
    %v97 = vld [vmem:[#allocation7 + $0x38] sm:$0xff]
    %v98 = vld [vmem:[#allocation7 + $0x40] sm:$0xff]
    %v99 = vld [vmem:[#allocation7 + $0x48] sm:$0xff]
    %v100 = vld [vmem:[#allocation7 + $0x50] sm:$0xff]
    %v101 = vld [vmem:[#allocation7 + $0x58] sm:$0xff]
    %v102 = vld [vmem:[#allocation7 + $0x60] sm:$0xff]
    %v103 = vld [vmem:[#allocation7 + $0x68] sm:$0xff]
    %v104 = vld [vmem:[#allocation7 + $0x70] sm:$0xff]
    %v105 = vld [vmem:[#allocation7 + $0x78] sm:$0xff]
    %v106 = vld [vmem:[%s7] sm:$0x1]
    %v107 = vld [vmem:[%s8] sm:$0x1]
    %v108 = vld [vmem:[#allocation2] sm:$0x1]
    %v110 = vlaneseq
    %v111 = vshrl.u32 %v110, 7
    %v112 = vsub.s32 0, %v111
    %v113 = vrot.slane %v89, %v112
    %vm115 = vcmask 261120
    %v117 = vsel %vm115, %v78, 0
    %119 = vmatprep.subr.mxu0 0.0
    %120 = vmatpush1.msra.mxu0 %v81
    %121 = vmatprep.subr.mxu0 0.0
    %122 = vmatpush1.msra.mxu0 %v82
    %123 = vmatprep.subr.mxu0 0.0
    %124 = vmatpush1.msra.mxu0 %v83
    %125 = vmatprep.subr.mxu0 0.0
    %126 = vmatpush1.msra.mxu0 %v84
    %127 = vmatprep.subr.mxu0 0.0
    %128 = vmatpush1.msra.mxu0 0.0
    %129 = vmatprep.subr.mxu0 0.0
    %130 = vmatpush1.msra.mxu0 0.0
    %131 = vmatprep.subr.mxu0 0.0
    %132 = vmatpush1.msra.mxu0 0.0
    %133 = vmatprep.subr.mxu0 0.0
    %134 = vmatpush1.msra.mxu0 0.0
    %135 = vmatprep.subr.mxu0 0.0
    %136 = vmatpush1.msra.mxu0 0.0
    %137 = vmatprep.subr.mxu0 0.0
    %138 = vmatpush1.msra.mxu0 0.0
    %139 = vmatprep.subr.mxu0 0.0
    %140 = vmatpush1.msra.mxu0 0.0
    %141 = vmatprep.subr.mxu0 0.0
    %142 = vmatpush1.msra.mxu0 0.0
    %143 = vmatprep.subr.mxu0 0.0
    %144 = vmatpush1.msra.mxu0 0.0
    %145 = vmatprep.subr.mxu0 0.0
    %146 = vmatpush1.msra.mxu0 0.0
    %147 = vmatprep.subr.mxu0 0.0
    %148 = vmatpush1.msra.mxu0 0.0
    %149 = vmatprep.subr.mxu0 0.0
    %150 = vmatpush1.msra.mxu0 0.0
    %151 = vmatprep.subr.mxu0 0.0
    %152 = vmatpush1.msra.mxu0 0.0
    %153 = vmatprep.subr.mxu0 0.0
    %154 = vmatpush1.msra.mxu0 0.0
    %155 = vmatprep.subr.mxu0 0.0
    %156 = vmatpush1.msra.mxu0 0.0
    %157 = vmatprep.subr.mxu0 0.0
    %158 = vmatpush1.msra.mxu0 0.0
    %159 = vmatprep.subr.mxu0 0.0
    %160 = vmatpush1.msra.mxu0 0.0
    %161 = vmatprep.subr.mxu0 0.0
    %162 = vmatpush1.msra.mxu0 0.0
    %163 = vmatprep.subr.mxu0 0.0
    %164 = vmatpush1.msra.mxu0 0.0
    %165 = vmatprep.subr.mxu0 0.0
    %166 = vmatpush1.msra.mxu0 0.0
    %167 = vmatprep.subr.mxu0 0.0
    %168 = vmatpush1.msra.mxu0 0.0
    %169 = vmatprep.subr.mxu0 0.0
    %170 = vmatpush1.msra.mxu0 0.0
    %171 = vmatprep.subr.mxu0 0.0
    %172 = vmatpush1.msra.mxu0 0.0
    %173 = vmatprep.subr.mxu0 0.0
    %174 = vmatpush1.msra.mxu0 0.0
    %175 = vmatprep.subr.mxu0 0.0
    %176 = vmatpush1.msra.mxu0 0.0
    %177 = vmatprep.subr.mxu0 0.0
    %178 = vmatpush1.msra.mxu0 0.0
    %179 = vmatprep.subr.mxu0 0.0
    %180 = vmatpush1.msra.mxu0 0.0
    %181 = vmatprep.subr.mxu0 0.0
    %182 = vmatpush1.msra.mxu0 0.0
    %183 = vmatprep.mubr.f32.mxu0 0.0
    %184 = vmatmul.mubr.f32.gmra.mrb[0].mxu0 %v117
    %v185 = vpop.f32.mrb[0].mxu0
    %v186 = vadd.f32 %v113, %v185
    %v187 = vpop.f32.mrb[0].mxu0
    %188 = vdwg.mxu0
    %v190 = vsel %vm115, %v79, 0
    %192 = vmatprep.subr.mxu0 0.0
    %193 = vmatpush1.msra.mxu0 %v85
    %194 = vmatprep.subr.mxu0 0.0
    %195 = vmatpush1.msra.mxu0 %v86
    %196 = vmatprep.subr.mxu0 0.0
    %197 = vmatpush1.msra.mxu0 %v87
    %198 = vmatprep.subr.mxu0 0.0
    %199 = vmatpush1.msra.mxu0 %v88
    %200 = vmatprep.subr.mxu0 0.0
    %201 = vmatpush1.msra.mxu0 0.0
    %202 = vmatprep.subr.mxu0 0.0
    %203 = vmatpush1.msra.mxu0 0.0
    %204 = vmatprep.subr.mxu0 0.0
    %205 = vmatpush1.msra.mxu0 0.0
    %206 = vmatprep.subr.mxu0 0.0
    %207 = vmatpush1.msra.mxu0 0.0
    %208 = vmatprep.subr.mxu0 0.0
    %209 = vmatpush1.msra.mxu0 0.0
    %210 = vmatprep.subr.mxu0 0.0
    %211 = vmatpush1.msra.mxu0 0.0
    %212 = vmatprep.subr.mxu0 0.0
    %213 = vmatpush1.msra.mxu0 0.0
    %214 = vmatprep.subr.mxu0 0.0
    %215 = vmatpush1.msra.mxu0 0.0
    %216 = vmatprep.subr.mxu0 0.0
    %217 = vmatpush1.msra.mxu0 0.0
    %218 = vmatprep.subr.mxu0 0.0
    %219 = vmatpush1.msra.mxu0 0.0
    %220 = vmatprep.subr.mxu0 0.0
    %221 = vmatpush1.msra.mxu0 0.0
    %222 = vmatprep.subr.mxu0 0.0
    %223 = vmatpush1.msra.mxu0 0.0
    %224 = vmatprep.subr.mxu0 0.0
    %225 = vmatpush1.msra.mxu0 0.0
    %226 = vmatprep.subr.mxu0 0.0
    %227 = vmatpush1.msra.mxu0 0.0
    %228 = vmatprep.subr.mxu0 0.0
    %229 = vmatpush1.msra.mxu0 0.0
    %230 = vmatprep.subr.mxu0 0.0
    %231 = vmatpush1.msra.mxu0 0.0
    %232 = vmatprep.subr.mxu0 0.0
    %233 = vmatpush1.msra.mxu0 0.0
    %234 = vmatprep.subr.mxu0 0.0
    %235 = vmatpush1.msra.mxu0 0.0
    %236 = vmatprep.subr.mxu0 0.0
    %237 = vmatpush1.msra.mxu0 0.0
    %238 = vmatprep.subr.mxu0 0.0
    %239 = vmatpush1.msra.mxu0 0.0
    %240 = vmatprep.subr.mxu0 0.0
    %241 = vmatpush1.msra.mxu0 0.0
    %242 = vmatprep.subr.mxu0 0.0
    %243 = vmatpush1.msra.mxu0 0.0
    %244 = vmatprep.subr.mxu0 0.0
    %245 = vmatpush1.msra.mxu0 0.0
    %246 = vmatprep.subr.mxu0 0.0
    %247 = vmatpush1.msra.mxu0 0.0
    %248 = vmatprep.subr.mxu0 0.0
    %249 = vmatpush1.msra.mxu0 0.0
    %250 = vmatprep.subr.mxu0 0.0
    %251 = vmatpush1.msra.mxu0 0.0
    %252 = vmatprep.subr.mxu0 0.0
    %253 = vmatpush1.msra.mxu0 0.0
    %254 = vmatprep.subr.mxu0 0.0
    %255 = vmatpush1.msra.mxu0 0.0
    %256 = vmatprep.mubr.f32.mxu0 0.0
    %257 = vmatmul.mubr.f32.gmra.mrb[0].mxu0 %v190
    %v258 = vpop.f32.mrb[0].mxu0
    %v259 = vadd.f32 %v186, %v258
    %v260 = vpop.f32.mrb[0].mxu0
    %261 = vdwg.mxu0
    %v262 = vmax.f32 %v259, 0.0
    %v264 = vsel %vm115, %v80, 0
    %266 = vmatprep.subr.mxu0 0.0
    %267 = vmatpush1.msra.mxu0 %v85
    %268 = vmatprep.subr.mxu0 0.0
    %269 = vmatpush1.msra.mxu0 %v86
    %270 = vmatprep.subr.mxu0 0.0
    %271 = vmatpush1.msra.mxu0 %v87
    %272 = vmatprep.subr.mxu0 0.0
    %273 = vmatpush1.msra.mxu0 %v88
    %274 = vmatprep.subr.mxu0 0.0
    %275 = vmatpush1.msra.mxu0 0.0
    %276 = vmatprep.subr.mxu0 0.0
    %277 = vmatpush1.msra.mxu0 0.0
    %278 = vmatprep.subr.mxu0 0.0
    %279 = vmatpush1.msra.mxu0 0.0
    %280 = vmatprep.subr.mxu0 0.0
    %281 = vmatpush1.msra.mxu0 0.0
    %282 = vmatprep.subr.mxu0 0.0
    %283 = vmatpush1.msra.mxu0 0.0
    %284 = vmatprep.subr.mxu0 0.0
    %285 = vmatpush1.msra.mxu0 0.0
    %286 = vmatprep.subr.mxu0 0.0
    %287 = vmatpush1.msra.mxu0 0.0
    %288 = vmatprep.subr.mxu0 0.0
    %289 = vmatpush1.msra.mxu0 0.0
    %290 = vmatprep.subr.mxu0 0.0
    %291 = vmatpush1.msra.mxu0 0.0
    %292 = vmatprep.subr.mxu0 0.0
    %293 = vmatpush1.msra.mxu0 0.0
    %294 = vmatprep.subr.mxu0 0.0
    %295 = vmatpush1.msra.mxu0 0.0
    %296 = vmatprep.subr.mxu0 0.0
    %297 = vmatpush1.msra.mxu0 0.0
    %298 = vmatprep.subr.mxu0 0.0
    %299 = vmatpush1.msra.mxu0 0.0
    %300 = vmatprep.subr.mxu0 0.0
    %301 = vmatpush1.msra.mxu0 0.0
    %302 = vmatprep.subr.mxu0 0.0
    %303 = vmatpush1.msra.mxu0 0.0
    %304 = vmatprep.subr.mxu0 0.0
    %305 = vmatpush1.msra.mxu0 0.0
    %306 = vmatprep.subr.mxu0 0.0
    %307 = vmatpush1.msra.mxu0 0.0
    %308 = vmatprep.subr.mxu0 0.0
    %309 = vmatpush1.msra.mxu0 0.0
    %310 = vmatprep.subr.mxu0 0.0
    %311 = vmatpush1.msra.mxu0 0.0
    %312 = vmatprep.subr.mxu0 0.0
    %313 = vmatpush1.msra.mxu0 0.0
    %314 = vmatprep.subr.mxu0 0.0
    %315 = vmatpush1.msra.mxu0 0.0
    %316 = vmatprep.subr.mxu0 0.0
    %317 = vmatpush1.msra.mxu0 0.0
    %318 = vmatprep.subr.mxu0 0.0
    %319 = vmatpush1.msra.mxu0 0.0
    %320 = vmatprep.subr.mxu0 0.0
    %321 = vmatpush1.msra.mxu0 0.0
    %322 = vmatprep.subr.mxu0 0.0
    %323 = vmatpush1.msra.mxu0 0.0
    %324 = vmatprep.subr.mxu0 0.0
    %325 = vmatpush1.msra.mxu0 0.0
    %326 = vmatprep.subr.mxu0 0.0
    %327 = vmatpush1.msra.mxu0 0.0
    %328 = vmatprep.subr.mxu0 0.0
    %329 = vmatpush1.msra.mxu0 0.0
    %330 = vmatprep.mubr.f32.mxu0 0.0
    %331 = vmatmul.mubr.f32.gmra.mrb[0].mxu0 %v264
    %v332 = vpop.f32.mrb[0].mxu0
    %v333 = vadd.f32 %v186, %v332
    %v334 = vpop.f32.mrb[0].mxu0
    %335 = vdwg.mxu0
    %v336 = vmax.f32 %v333, 0.0
    %v338 = vlaneseq
    %v339 = vshrl.u32 %v338, 7
    %v340 = vsub.s32 0, %v339
    %v341 = vrot.slane %v106, %v340
    %343 = vmatprep.subr.mxu0 0.0
    %344 = vmatpush1.msra.mxu0 %v90
    %345 = vmatprep.subr.mxu0 0.0
    %346 = vmatpush1.msra.mxu0 %v91
    %347 = vmatprep.subr.mxu0 0.0
    %348 = vmatpush1.msra.mxu0 %v92
    %349 = vmatprep.subr.mxu0 0.0
    %350 = vmatpush1.msra.mxu0 %v93
    %351 = vmatprep.subr.mxu0 0.0
    %352 = vmatpush1.msra.mxu0 %v94
    %353 = vmatprep.subr.mxu0 0.0
    %354 = vmatpush1.msra.mxu0 %v95
    %355 = vmatprep.subr.mxu0 0.0
    %356 = vmatpush1.msra.mxu0 %v96
    %357 = vmatprep.subr.mxu0 0.0
    %358 = vmatpush1.msra.mxu0 %v97
    %359 = vmatprep.subr.mxu0 0.0
    %360 = vmatpush1.msra.mxu0 %v98
    %361 = vmatprep.subr.mxu0 0.0
    %362 = vmatpush1.msra.mxu0 %v99
    %363 = vmatprep.subr.mxu0 0.0
    %364 = vmatpush1.msra.mxu0 %v100
    %365 = vmatprep.subr.mxu0 0.0
    %366 = vmatpush1.msra.mxu0 %v101
    %367 = vmatprep.subr.mxu0 0.0
    %368 = vmatpush1.msra.mxu0 %v102
    %369 = vmatprep.subr.mxu0 0.0
    %370 = vmatpush1.msra.mxu0 %v103
    %371 = vmatprep.subr.mxu0 0.0
    %372 = vmatpush1.msra.mxu0 %v104
    %373 = vmatprep.subr.mxu0 0.0
    %374 = vmatpush1.msra.mxu0 %v105
    %375 = vmatprep.subr.mxu0 0.0
    %376 = vmatpush1.msra.mxu0 0.0
    %377 = vmatprep.subr.mxu0 0.0
    %378 = vmatpush1.msra.mxu0 0.0
    %379 = vmatprep.subr.mxu0 0.0
    %380 = vmatpush1.msra.mxu0 0.0
    %381 = vmatprep.subr.mxu0 0.0
    %382 = vmatpush1.msra.mxu0 0.0
    %383 = vmatprep.subr.mxu0 0.0
    %384 = vmatpush1.msra.mxu0 0.0
    %385 = vmatprep.subr.mxu0 0.0
    %386 = vmatpush1.msra.mxu0 0.0
    %387 = vmatprep.subr.mxu0 0.0
    %388 = vmatpush1.msra.mxu0 0.0
    %389 = vmatprep.subr.mxu0 0.0
    %390 = vmatpush1.msra.mxu0 0.0
    %391 = vmatprep.subr.mxu0 0.0
    %392 = vmatpush1.msra.mxu0 0.0
    %393 = vmatprep.subr.mxu0 0.0
    %394 = vmatpush1.msra.mxu0 0.0
    %395 = vmatprep.subr.mxu0 0.0
    %396 = vmatpush1.msra.mxu0 0.0
    %397 = vmatprep.subr.mxu0 0.0
    %398 = vmatpush1.msra.mxu0 0.0
    %399 = vmatprep.subr.mxu0 0.0
    %400 = vmatpush1.msra.mxu0 0.0
    %401 = vmatprep.subr.mxu0 0.0
    %402 = vmatpush1.msra.mxu0 0.0
    %403 = vmatprep.subr.mxu0 0.0
    %404 = vmatpush1.msra.mxu0 0.0
    %405 = vmatprep.subr.mxu0 0.0
    %406 = vmatpush1.msra.mxu0 0.0
    %407 = vmatprep.mubr.f32.mxu0 0.0
    %408 = vmatmul.mubr.f32.gmra.mrb[0].mxu0 %v262
    %v409 = vpop.f32.mrb[0].mxu0
    %v410 = vadd.f32 %v341, %v409
    %v411 = vpop.f32.mrb[0].mxu0
    %412 = vdwg.mxu0
    %v413 = vmax.f32 %v410, 0.0
    %414 = vmatprep.subr.mxu0 0.0
    %415 = vmatpush1.msra.mxu0 %v90
    %416 = vmatprep.subr.mxu0 0.0
    %417 = vmatpush1.msra.mxu0 %v91
    %418 = vmatprep.subr.mxu0 0.0
    %419 = vmatpush1.msra.mxu0 %v92
    %420 = vmatprep.subr.mxu0 0.0
    %421 = vmatpush1.msra.mxu0 %v93
    %422 = vmatprep.subr.mxu0 0.0
    %423 = vmatpush1.msra.mxu0 %v94
    %424 = vmatprep.subr.mxu0 0.0
    %425 = vmatpush1.msra.mxu0 %v95
    %426 = vmatprep.subr.mxu0 0.0
    %427 = vmatpush1.msra.mxu0 %v96
    %428 = vmatprep.subr.mxu0 0.0
    %429 = vmatpush1.msra.mxu0 %v97
    %430 = vmatprep.subr.mxu0 0.0
    %431 = vmatpush1.msra.mxu0 %v98
    %432 = vmatprep.subr.mxu0 0.0
    %433 = vmatpush1.msra.mxu0 %v99
    %434 = vmatprep.subr.mxu0 0.0
    %435 = vmatpush1.msra.mxu0 %v100
    %436 = vmatprep.subr.mxu0 0.0
    %437 = vmatpush1.msra.mxu0 %v101
    %438 = vmatprep.subr.mxu0 0.0
    %439 = vmatpush1.msra.mxu0 %v102
    %440 = vmatprep.subr.mxu0 0.0
    %441 = vmatpush1.msra.mxu0 %v103
    %442 = vmatprep.subr.mxu0 0.0
    %443 = vmatpush1.msra.mxu0 %v104
    %444 = vmatprep.subr.mxu0 0.0
    %445 = vmatpush1.msra.mxu0 %v105
    %446 = vmatprep.subr.mxu0 0.0
    %447 = vmatpush1.msra.mxu0 0.0
    %448 = vmatprep.subr.mxu0 0.0
    %449 = vmatpush1.msra.mxu0 0.0
    %450 = vmatprep.subr.mxu0 0.0
    %451 = vmatpush1.msra.mxu0 0.0
    %452 = vmatprep.subr.mxu0 0.0
    %453 = vmatpush1.msra.mxu0 0.0
    %454 = vmatprep.subr.mxu0 0.0
    %455 = vmatpush1.msra.mxu0 0.0
    %456 = vmatprep.subr.mxu0 0.0
    %457 = vmatpush1.msra.mxu0 0.0
    %458 = vmatprep.subr.mxu0 0.0
    %459 = vmatpush1.msra.mxu0 0.0
    %460 = vmatprep.subr.mxu0 0.0
    %461 = vmatpush1.msra.mxu0 0.0
    %462 = vmatprep.subr.mxu0 0.0
    %463 = vmatpush1.msra.mxu0 0.0
    %464 = vmatprep.subr.mxu0 0.0
    %465 = vmatpush1.msra.mxu0 0.0
    %466 = vmatprep.subr.mxu0 0.0
    %467 = vmatpush1.msra.mxu0 0.0
    %468 = vmatprep.subr.mxu0 0.0
    %469 = vmatpush1.msra.mxu0 0.0
    %470 = vmatprep.subr.mxu0 0.0
    %471 = vmatpush1.msra.mxu0 0.0
    %472 = vmatprep.subr.mxu0 0.0
    %473 = vmatpush1.msra.mxu0 0.0
    %474 = vmatprep.subr.mxu0 0.0
    %475 = vmatpush1.msra.mxu0 0.0
    %476 = vmatprep.subr.mxu0 0.0
    %477 = vmatpush1.msra.mxu0 0.0
    %478 = vmatprep.mubr.f32.mxu0 0.0
    %479 = vmatmul.mubr.f32.gmra.mrb[0].mxu0 %v336
    %v480 = vpop.f32.mrb[0].mxu0
    %v481 = vadd.f32 %v341, %v480
    %v482 = vpop.f32.mrb[0].mxu0
    %483 = vdwg.mxu0
    %v484 = vmax.f32 %v481, 0.0
    %v486 = vlaneseq
    %v487 = vshrl.u32 %v486, 7
    %v488 = vsub.s32 0, %v487
    %v489 = vrot.slane %v107, %v488
    %v491 = vmul.f32 %v413, %v489
    %492 = vadd.xlane.f32.xlu0 %v491
    %v493 = vpop.xlane.xlu0 %492
    %v495 = vlaneseq
    %v496 = vshrl.u32 %v495, 7
    %v497 = vsub.s32 0, %v496
    %v498 = vrot.slane %v108, %v497
    %v500 = vadd.f32 %v493, %v498
    %v501 = vmul.f32 %v484, %v489
    %502 = vadd.xlane.f32.xlu0 %v501
    %v503 = vpop.xlane.xlu0 %502
    %v504 = vadd.f32 %v503, %v498
    %v505 = vsub.f32 0.0, %v500
    %v506 = vmax.f32 %v505, 0.0
    %vm507 = vcmp.ne.f32.partialorder %v505, %v505
    %v508 = vadd.f32 %v505, 0.0
    %v509 = vand.u32 2147483647, %v505
    %v510 = vsub.f32 0.0, %v509
    %v511 = vmul.f32 %v510, 1.442695
    %v512 = vpow.pop %v511
    %v513 = vadd.f32 %v512, 1.0
    %v514 = vlog2.pop %v513
    %v515 = vmul.f32 %v514, 0.6931472
    %v516 = vmul.f32 -0.5, %v512
    %v517 = vadd.f32 %v516, 1.0
    %v518 = vmul.f32 %v517, %v512
    %v519 = vand.u32 2147483647, %v512
    %vm520 = vcmp.lt.f32.partialorder %v519, 0.0004427343
    %v521 = vsel %vm520, %v518, %v515
    %v522 = vadd.f32 %v506, %v521
    %v523 = vsel %vm507, %v508, %v522
    %v524 = vmax.f32 %v504, 0.0
    %vm525 = vcmp.ne.f32.partialorder %v504, %v504
    %v526 = vadd.f32 %v504, 0.0
    %v527 = vand.u32 2147483647, %v504
    %v528 = vsub.f32 0.0, %v527
    %v529 = vmul.f32 %v528, 1.442695
    %v530 = vpow.pop %v529
    %v531 = vadd.f32 %v530, 1.0
    %v532 = vlog2.pop %v531
    %v533 = vmul.f32 %v532, 0.6931472
    %v534 = vmul.f32 -0.5, %v530
    %v535 = vadd.f32 %v534, 1.0
    %v536 = vmul.f32 %v535, %v530
    %v537 = vand.u32 2147483647, %v530
    %vm538 = vcmp.lt.f32.partialorder %v537, 0.0004427343
    %v539 = vsel %vm538, %v536, %v533
    %v540 = vadd.f32 %v524, %v539
    %v541 = vsel %vm525, %v526, %v540
    %v542 = vadd.f32 %v523, %v541
    %vm543 = vcmask 7168
    %v544 = vsel %vm543, %v542, 0.0
    %545 = vadd.xlane.f32.xlu0 %v544
    %v546 = vpop.xlane.xlu0 %545
    %v547 = vrot.slane %v546, 4
    %v548 = vadd.f32 %v546, %v547
    %v549 = vrot.slane %v548, 2
    %v550 = vadd.f32 %v548, %v549
    %v551 = vrot.slane %v550, 1
    %v552 = vadd.f32 %v550, %v551
    %s553 = vtos %v552
    %vm554 = vcmp.gt.f32.partialorder %v500, 0.0
    %v555 = vsel %vm554, 1, 0
    %v556 = vcvt.s32.f32 %v555
    %v557 = vsel %vm543, %v556, 0.0
    %558 = vadd.xlane.f32.xlu0 %v557
    %v559 = vpop.xlane.xlu0 %558
    %v560 = vrot.slane %v559, 4
    %v561 = vadd.f32 %v559, %v560
    %v562 = vrot.slane %v561, 2
    %v563 = vadd.f32 %v561, %v562
    %v564 = vrot.slane %v563, 1
    %v565 = vadd.f32 %v563, %v564
    %s566 = vtos %v565
    %vm567 = vcmp.lt.f32.partialorder %v504, 0.0
    %v568 = vsel %vm567, 1, 0
    %v569 = vcvt.s32.f32 %v568
    %v570 = vsel %vm543, %v569, 0.0
    %571 = vadd.xlane.f32.xlu0 %v570
    %v572 = vpop.xlane.xlu0 %571
    %v573 = vrot.slane %v572, 4
    %v574 = vadd.f32 %v572, %v573
    %v575 = vrot.slane %v574, 2
    %v576 = vadd.f32 %v574, %v575
    %v577 = vrot.slane %v576, 1
    %v578 = vadd.f32 %v576, %v577
    %s579 = vtos %v578
    %v580 = vsel %vm543, %v500, 0.0
    %581 = vadd.xlane.f32.xlu0 %v580
    %v582 = vpop.xlane.xlu0 %581
    %v583 = vrot.slane %v582, 4
    %v584 = vadd.f32 %v582, %v583
    %v585 = vrot.slane %v584, 2
    %v586 = vadd.f32 %v584, %v585
    %v587 = vrot.slane %v586, 1
    %v588 = vadd.f32 %v586, %v587
    %s589 = vtos %v588
    %v590 = vlaneseq
    %v591 = vshrl.u32 %v590, 7
    %v592 = vlaneseq
    %v593 = vand.u32 %v592, 127
    %vm594 = vcmp.eq.s32.totalorder %v591, 0
    %vm595 = vcmp.eq.s32.totalorder %v593, 0
    %vm596 = vmand %vm594, %vm595
    %v597 = vstv %s553
    %v598 = vsel %vm596, %v597, 0.0
    %vm599 = vcmp.eq.s32.totalorder %v593, 1
    %vm600 = vmand %vm594, %vm599
    %v601 = vstv %s566
    %v602 = vsel %vm600, %v601, %v598
    %vm603 = vcmp.eq.s32.totalorder %v593, 2
    %vm604 = vmand %vm594, %vm603
    %v605 = vstv %s579
    %v606 = vsel %vm604, %v605, %v602
    %vm607 = vcmp.eq.s32.totalorder %v593, 3
    %vm608 = vmand %vm594, %vm607
    %v609 = vstv %s589
    %v610 = vsel %vm608, %v609, %v606
    %611 = vst [vmem:[%s10] sm:$0xff] %v610
    // Predicated region
    $region54: #{mi_forward.1} parent=1 // pred_check
      _
    $region55: #{mi_forward.1} parent=1 // pred_check_branch
      %613 = sbr.rel (0) target = $region57
    $region56: #{mi_forward.1} parent=1 // pred_region
      _
    $region57: #{mi_forward.1} parent=1 // pred_fallthru
      _
    // Predicated region
    $region58: #{mi_forward.1} parent=1 // pred_check
      _
    $region59: #{mi_forward.1} parent=1 // pred_check_branch
      %615 = sbr.rel (0) target = $region61
    $region60: #{mi_forward.1} parent=1 // pred_region
      _
    $region61: #{mi_forward.1} parent=1 // pred_fallthru
      _
    %616 = vsyncpa [#allocation4], 1
    %617 = vsyncpa [#allocation6], 1

</llo_original>
